<compile_context>
chip_gen: v7x
topology: tpu7x:2x2x1
jax: 0.10.0
libtpu: 0.0.40
codegen_flags: <defaults>
</compile_context>

<pallas_src>
import functools
from itertools import chain

import numpy as np
import jax
import jax.numpy as jnp
from jax.experimental import pallas as pl
from jax.experimental.pallas import tpu as pltpu


def _round_up(x, m):
    return ((x + m - 1) // m) * m


# ------------------------------ Pallas kernel --------------------------------
def _make_kernel(n_axes, tm, r_total_pad):
    """Build a (tm, Cin) positional-table tile via one multi-hot MXU gather and
    project it with the fused nn.Linear, all in VMEM."""

    def kernel(*refs):
        idx_refs = refs[:n_axes]            # each (tm, 1) int32 (band offsets pre-added)
        emb_ref = refs[n_axes]              # (R_total_pad, Cin)  bf16, block-diagonal
        w_ref = refs[n_axes + 1]            # (Cin, Dout_pad)     bf16
        b_ref = refs[n_axes + 2]            # (1, Dout_pad)       f32
        o_ref = refs[n_axes + 3]            # (tm, Dout_pad)      f32

        # Multi-hot selector: exactly one 1.0 per axis, in disjoint row bands.
        iota = jax.lax.broadcasted_iota(jnp.int32, (tm, r_total_pad), 1)
        sel = jnp.zeros((tm, r_total_pad), jnp.float32)
        for a in range(n_axes):             # static, tiny loop (VPU compares)
            sel = sel + jnp.where(iota == idx_refs[a][...], 1.0, 0.0)
        sel = sel.astype(jnp.bfloat16)

        # Gather + lane-concat of the per-axis embedding rows in ONE MXU pass
        # (exact: selector entries are 0/1, off-band table entries are 0).
        table = jnp.dot(sel, emb_ref[...],
                        preferred_element_type=jnp.float32)        # (tm, Cin)
        # Projection (nn.Linear) with f32 accumulation + f32 bias.
        out = jnp.dot(table.astype(jnp.bfloat16), w_ref[...],
                      preferred_element_type=jnp.float32)          # (tm, Dout_pad)
        o_ref[...] = out + b_ref[...]

    return kernel


def _fused_forward(idx_arrays, emb_stacked, w_t_pad, b_pad, *,
                   n, n_axes, embed_dims, dout_pad, tm, r_total_pad, cin):
    n_pad = idx_arrays[0].shape[0]
    kernel = _make_kernel(n_axes, tm, r_total_pad)

    idx_specs = [pl.BlockSpec((tm, 1), lambda i: (i, 0)) for _ in range(n_axes)]
    # Table / weight / bias are tiny and grid-constant (index_map == (0, 0)):
    # Pallas only re-DMAs a block when its index changes, so they land in VMEM
    # once and stay resident for the whole grid.
    emb_spec = pl.BlockSpec((r_total_pad, cin), lambda i: (0, 0))
    w_spec = pl.BlockSpec((cin, dout_pad), lambda i: (0, 0))
    b_spec = pl.BlockSpec((1, dout_pad), lambda i: (0, 0))
    out_spec = pl.BlockSpec((tm, dout_pad), lambda i: (i, 0))

    out_pad = pl.pallas_call(
        kernel,
        out_shape=jax.ShapeDtypeStruct((n_pad, dout_pad), jnp.float32),
        grid_spec=pltpu.PrefetchScalarGridSpec(
            num_scalar_prefetch=0,
            grid=(n_pad // tm,),
            in_specs=idx_specs + [emb_spec, w_spec, b_spec],
            out_specs=out_spec,
        ),
        compiler_params=pltpu.CompilerParams(
            # Row tiles are independent -> shards across v7x's 2 TensorCores
            # when the grid has >= 2 steps; harmless no-op on v5e/v6e.
            dimension_semantics=("parallel",),
        ),
    )(*idx_arrays, emb_stacked, w_t_pad, b_pad)

    return out_pad[:n, :embed_dims].reshape(1, n, embed_dims)


# -------------------------- Module reimplementation --------------------------
class LearnableSqueezePositionalEncoding:
    def __init__(self, num_embeds, embed_dims, squeeze_dims=None, *,
                 key=None, row_tile=512):
        self.shape = tuple(num_embeds)
        self.squeeze_dims = tuple(squeeze_dims) if squeeze_dims else None
        self.embed_dims = int(embed_dims)

        n_axes = len(self.shape)
        half = embed_dims // 2
        # TODO(synk): PyTorch's `n_emb * squeeze_dims[i] if squeeze_dims else 1`
        # precedence makes the squeeze_dims=None branch degenerate (1-row
        # embeddings, unflattened output); here None is treated as all-ones
        # squeeze factors instead.
        sq = self.squeeze_dims if self.squeeze_dims else (1,) * n_axes
        rows_per_axis = tuple(int(self.shape[i] * sq[i]) for i in range(n_axes))
        cin = half * n_axes

        key = jax.random.PRNGKey(0) if key is None else key
        keys = jax.random.split(key, n_axes + 2)

        # nn.Embedding weights: normal(0, 1), shape (rows, half).
        self.embed_weights = [
            jax.random.normal(keys[i], (rows_per_axis[i], half), jnp.float32)
            for i in range(n_axes)
        ]
        # nn.Linear(cin, embed_dims): uniform(-k, k), PyTorch (out, in) layout.
        bound = float(1.0 / np.sqrt(cin))
        self.proj_w = jax.random.uniform(keys[-2], (embed_dims, cin),
                                         jnp.float32, -bound, bound)
        self.proj_b = jax.random.uniform(keys[-1], (embed_dims,),
                                         jnp.float32, -bound, bound)

        # ---------------- kernel-ready constants, built ONCE ----------------
        n = int(np.prod(rows_per_axis))
        # Largest row tile up to `row_tile` (multiple of 8); whole N in one
        # step when N is small (the demo).  Keep well below v7x's 64 MiB VMEM.
        tm = max(8, (min(int(row_tile), _round_up(n, 8)) // 8) * 8)
        n_pad = _round_up(n, tm)
        dout_pad = _round_up(self.embed_dims, 128)   # lane-dense stores

        # Block-diagonal stack of the per-axis embedding tables:
        #   rows [off_a, off_a + R_a), cols [a*half, (a+1)*half) = emb_a.
        offsets = np.concatenate([[0], np.cumsum(rows_per_axis)]).astype(np.int64)
        r_total = int(offsets[-1])
        r_total_pad = _round_up(r_total, 8)
        emb_stacked = np.zeros((r_total_pad, cin), np.float32)
        for a in range(n_axes):
            emb_stacked[offsets[a]:offsets[a] + rows_per_axis[a],
                        a * half:(a + 1) * half] = np.asarray(self.embed_weights[a])
        self._emb_stacked = jnp.asarray(emb_stacked).astype(jnp.bfloat16)

        # Per-row embedding indices from the flatten order
        # (s0..s_{k-1}, q0..q_{k-1});  idx_a = s_a * Q_a + q_a + band_offset_a.
        dims = list(self.shape) + list(sq)
        coords = np.indices(dims).reshape(2 * n_axes, -1)    # (2k, N)
        idx_arrays = []
        for a in range(n_axes):
            ia = (coords[a] * sq[a] + coords[n_axes + a] + offsets[a]).astype(np.int32)
            ia_pad = np.full((n_pad, 1), int(offsets[a]), np.int32)
            ia_pad[:n, 0] = ia
            idx_arrays.append(jnp.asarray(ia_pad))
        self._idx_arrays = idx_arrays

        # bf16 MXU weight, pre-transposed to (Cin, Dout_pad); f32 bias.
        w_t_pad = np.zeros((cin, dout_pad), np.float32)
        w_t_pad[:, :self.embed_dims] = np.asarray(self.proj_w).T
        self._w_t_pad = jnp.asarray(w_t_pad).astype(jnp.bfloat16)
        b_pad = np.zeros((1, dout_pad), np.float32)
        b_pad[0, :self.embed_dims] = np.asarray(self.proj_b)
        self._b_pad = jnp.asarray(b_pad)

        self.num_positions = n
        self._forward = jax.jit(functools.partial(
            _fused_forward,
            n=n, n_axes=n_axes, embed_dims=self.embed_dims, dout_pad=dout_pad,
            tm=tm, r_total_pad=r_total_pad, cin=cin))

    def __call__(self):
        return self._forward(self._idx_arrays, self._emb_stacked,
                             self._w_t_pad, self._b_pad)

    # -------------- pure-JAX references for correctness checking -------------
    def _build_table(self):
        n_axes = len(self.shape)
        sq = self.squeeze_dims if self.squeeze_dims else (1,) * n_axes
        full = [self.shape[i] * sq[i] for i in range(n_axes)]
        embeds = []
        for i, s in enumerate(self.shape):
            shp = [1] * n_axes
            shp[i] = s * sq[i]
            w = self.embed_weights[i]
            e = w.reshape(1, *shp, -1)
            e = jnp.broadcast_to(e, (1, *full, w.shape[-1]))
            embeds.append(e)
        embed = jnp.concatenate(embeds, axis=-1)           # (1, *full, Cin)
        if self.squeeze_dims:
            shp = list(chain(*[(self.shape[i], sq[i]) for i in range(n_axes)]))
            dims = [2 * i + 1 for i in range(n_axes)] + [2 * i + 2 for i in range(n_axes)]
            embed = embed.reshape(1, *shp, -1)
            embed = jnp.transpose(embed, (0, *dims, embed.ndim - 1))
        return embed.reshape(1, -1, embed.shape[-1])        # (1, N, Cin)

    def reference(self, compute_dtype=jnp.float32):
        table = self._build_table()[0]                      # (N, Cin) f32
        w_t = self.proj_w.T
        if compute_dtype == jnp.bfloat16:
            out = jnp.dot(table.astype(jnp.bfloat16), w_t.astype(jnp.bfloat16),
                          preferred_element_type=jnp.float32) + self.proj_b
        else:
            out = jnp.dot(table, w_t, preferred_element_type=jnp.float32,
                          precision=jax.lax.Precision.HIGHEST) + self.proj_b
        return out.reshape(1, -1, self.embed_dims)


# ---------------------------------- main --------------------------------------
if __name__ == "__main__":
    # Small shapes: BEV grid 4x4, squeeze factors (2, 2), embed_dims 32
    # -> N = (4*2)*(4*2) = 64 positions, Cin = 16*2 = 32, Dout = 32 (padded to 128).
    num_embeds = (4, 4)
    squeeze_dims = (2, 2)
    embed_dims = 32

    mod = LearnableSqueezePositionalEncoding(
        num_embeds, embed_dims, squeeze_dims, key=jax.random.PRNGKey(0))

    out = mod()
    out = jax.block_until_ready(out)
    assert out.shape == (1, 64, embed_dims), out.shape

    # Tight check vs. a bf16-operand reference (kernel uses bf16 operands,
    # f32 accumulation) and a loose check vs. the full-f32 module semantics.
    ref_bf16 = mod.reference(jnp.bfloat16)
    ref_f32 = mod.reference()
    err_b = float(jnp.max(jnp.abs(out - ref_bf16)))
    err_f = float(jnp.max(jnp.abs(out - ref_f32)))
    assert jnp.allclose(out, ref_bf16, atol=2e-3, rtol=2e-3), err_b
    assert jnp.allclose(out, ref_f32, atol=5e-2, rtol=5e-2), err_f
    print("KERNEL_OK")
</pallas_src>

<mosaic_0001>
module attributes {stable_mosaic.version = 11 : i64} {
  func.func @kernel(%arg0: i32, %arg1: memref<64x1xi32, #tpu.memory_space<vmem>>, %arg2: memref<64x1xi32, #tpu.memory_space<vmem>>, %arg3: memref<16x32xbf16, #tpu.memory_space<vmem>>, %arg4: memref<32x128xbf16, #tpu.memory_space<vmem>>, %arg5: memref<1x128xf32, #tpu.memory_space<vmem>>, %arg6: memref<64x128xf32, #tpu.memory_space<vmem>>) attributes {dimension_semantics = [#tpu.dimension_semantics<parallel>], iteration_bounds = array<i64: 1>, scalar_prefetch = 0 : i64, scratch_operands = 0 : i64, tpu.core_type = #tpu.core_type<tc>, window_params = [{transform_indices = @transform_0, window_bounds = array<i64: 64, 1>}, {transform_indices = @transform_1, window_bounds = array<i64: 64, 1>}, {pipeline_mode = #tpu.pipeline_mode<synchronous>, transform_indices = @transform_2, window_bounds = array<i64: 16, 32>}, {pipeline_mode = #tpu.pipeline_mode<synchronous>, transform_indices = @transform_3, window_bounds = array<i64: 32, 128>}, {pipeline_mode = #tpu.pipeline_mode<synchronous>, transform_indices = @transform_4, window_bounds = array<i64: 1, 128>}, {transform_indices = @transform_5, window_bounds = array<i64: 64, 128>}]} {
    %0 = tpu.iota {dimensions = array<i32: 1>} : vector<64x16xi32>
    %cst = arith.constant 0.000000e+00 : f32
    %1 = vector.broadcast %cst : f32 to vector<64x16xf32>
    %c0 = arith.constant 0 : index
    %c0_0 = arith.constant 0 : index
    %2 = vector.load %arg1[%c0, %c0_0] : memref<64x1xi32, #tpu.memory_space<vmem>>, vector<64x1xi32>
    %3 = vector.broadcast %2 : vector<64x1xi32> to vector<64x16xi32>
    %4 = arith.cmpi eq, %0, %3 : vector<64x16xi32>
    %cst_1 = arith.constant 1.000000e+00 : f32
    %cst_2 = arith.constant 0.000000e+00 : f32
    %5 = vector.broadcast %cst_1 : f32 to vector<64x16xf32>
    %6 = vector.broadcast %cst_2 : f32 to vector<64x16xf32>
    %7 = arith.select %4, %5, %6 : vector<64x16xi1>, vector<64x16xf32>
    %8 = arith.addf %1, %7 : vector<64x16xf32>
    %c0_3 = arith.constant 0 : index
    %c0_4 = arith.constant 0 : index
    %9 = vector.load %arg2[%c0_3, %c0_4] : memref<64x1xi32, #tpu.memory_space<vmem>>, vector<64x1xi32>
    %10 = vector.broadcast %9 : vector<64x1xi32> to vector<64x16xi32>
    %11 = arith.cmpi eq, %0, %10 : vector<64x16xi32>
    %cst_5 = arith.constant 1.000000e+00 : f32
    %cst_6 = arith.constant 0.000000e+00 : f32
    %12 = vector.broadcast %cst_5 : f32 to vector<64x16xf32>
    %13 = vector.broadcast %cst_6 : f32 to vector<64x16xf32>
    %14 = arith.select %11, %12, %13 : vector<64x16xi1>, vector<64x16xf32>
    %15 = arith.addf %8, %14 : vector<64x16xf32>
    %16 = arith.truncf %15 : vector<64x16xf32> to vector<64x16xbf16>
    %c0_7 = arith.constant 0 : index
    %c0_8 = arith.constant 0 : index
    %17 = vector.load %arg3[%c0_7, %c0_8] : memref<16x32xbf16, #tpu.memory_space<vmem>>, vector<16x32xbf16>
    %cst_9 = arith.constant dense<0.000000e+00> : vector<64x32xf32>
    %18 = tpu.matmul %16, %17, %cst_9 {dimension_numbers = #tpu.dot_dimension_numbers<[1], [0], [0], [1], [0, 0, 1, 1], [], []>} : vector<64x16xbf16>, vector<16x32xbf16>, vector<64x32xf32> -> vector<64x32xf32>
    %19 = arith.truncf %18 : vector<64x32xf32> to vector<64x32xbf16>
    %c0_10 = arith.constant 0 : index
    %c0_11 = arith.constant 0 : index
    %20 = vector.load %arg4[%c0_10, %c0_11] : memref<32x128xbf16, #tpu.memory_space<vmem>>, vector<32x128xbf16>
    %cst_12 = arith.constant dense<0.000000e+00> : vector<64x128xf32>
    %21 = tpu.matmul %19, %20, %cst_12 {dimension_numbers = #tpu.dot_dimension_numbers<[1], [0], [0], [1], [0, 0, 1, 1], [], []>} : vector<64x32xbf16>, vector<32x128xbf16>, vector<64x128xf32> -> vector<64x128xf32>
    %c0_13 = arith.constant 0 : index
    %c0_14 = arith.constant 0 : index
    %22 = vector.load %arg5[%c0_13, %c0_14] : memref<1x128xf32, #tpu.memory_space<vmem>>, vector<1x128xf32>
    %23 = vector.broadcast %22 : vector<1x128xf32> to vector<64x128xf32>
    %24 = arith.addf %21, %23 : vector<64x128xf32>
    %c0_15 = arith.constant 0 : index
    %c0_16 = arith.constant 0 : index
    %25 = vector.load %arg6[%c0_15, %c0_16] : memref<64x128xf32, #tpu.memory_space<vmem>>, vector<64x128xf32>
    tpu.vector_store %arg6[%c0_15, %c0_16], %24 {strides = array<i32>} : memref<64x128xf32, #tpu.memory_space<vmem>>, vector<64x128xf32>,
    return
  }
  func.func @transform_0(%arg0: i32) -> (i32, i32) {
    %c0_i32 = arith.constant 0 : i32
    %c0_i32_0 = arith.constant 0 : i32
    return %arg0, %c0_i32 : i32, i32
  }
  func.func @transform_1(%arg0: i32) -> (i32, i32) {
    %c0_i32 = arith.constant 0 : i32
    %c0_i32_0 = arith.constant 0 : i32
    return %arg0, %c0_i32 : i32, i32
  }
  func.func @transform_2(%arg0: i32) -> (i32, i32) {
    %c0_i32 = arith.constant 0 : i32
    %c0_i32_0 = arith.constant 0 : i32
    %c0_i32_1 = arith.constant 0 : i32
    return %c0_i32, %c0_i32_0 : i32, i32
  }
  func.func @transform_3(%arg0: i32) -> (i32, i32) {
    %c0_i32 = arith.constant 0 : i32
    %c0_i32_0 = arith.constant 0 : i32
    %c0_i32_1 = arith.constant 0 : i32
    return %c0_i32, %c0_i32_0 : i32, i32
  }
  func.func @transform_4(%arg0: i32) -> (i32, i32) {
    %c0_i32 = arith.constant 0 : i32
    %c0_i32_0 = arith.constant 0 : i32
    %c0_i32_1 = arith.constant 0 : i32
    return %c0_i32, %c0_i32_0 : i32, i32
  }
  func.func @transform_5(%arg0: i32) -> (i32, i32) {
    %c0_i32 = arith.constant 0 : i32
    %c0_i32_0 = arith.constant 0 : i32
    return %arg0, %c0_i32 : i32, i32
  }
}

</mosaic_0001>

<llo_original>
// kernel: _fused_forward.1
$region0: #{_fused_forward.1}
  #allocation0 [shape = 'u32[]', space=smem, size = 0x4, offset = 0x4, fixed_abs, tag = 'smem constant byte address 0x4 - core index']
  #allocation1 [shape = 'u32[144,128]{1,0:T(1,128)}', space=vmem, size = 0x12000, scoped, tag = 'internal scratch']
  %s0 = inlined_call_operand.vmem [shape: s32[64,1], index: 0, kind: input, shape index: {}]
  %s1 = inlined_call_operand.vmem [shape: s32[64,1], index: 1, kind: input, shape index: {}]
  %s2 = inlined_call_operand.vmem [shape: bf16[16,32], index: 2, kind: input, shape index: {}]
  %s3 = inlined_call_operand.vmem [shape: bf16[32,128], index: 3, kind: input, shape index: {}]
  %s4 = inlined_call_operand.vmem [shape: f32[1,128], index: 4, kind: input, shape index: {}]
  %s5 = inlined_call_operand.vmem [shape: f32[64,128], index: 5, kind: output, shape index: {}]
  %s6 = sld [smem:[#allocation0]]
  $region30: #{_fused_forward.1} parent=0
    _
  %s8 = ssub.s32 1, %s6
  %s9 = scalar_select 0, %s8, %s6
  // Predicated region
  $region2: #{_fused_forward.1} parent=0 // pred_check
    _
  $region3: #{_fused_forward.1} parent=0 // pred_check_branch
    %11 = sbr.rel (0) target = $region5
  $region4: #{_fused_forward.1} parent=0 // pred_region
    _
  $region5: #{_fused_forward.1} parent=0 // pred_fallthru
    _
  // Predicated region
  $region6: #{_fused_forward.1} parent=0 // pred_check
    _
  $region7: #{_fused_forward.1} parent=0 // pred_check_branch
    %13 = sbr.rel (0) target = $region9
  $region8: #{_fused_forward.1} parent=0 // pred_region
    _
  $region9: #{_fused_forward.1} parent=0 // pred_fallthru
    _
  // Predicated region
  $region10: #{_fused_forward.1} parent=0 // pred_check
    _
  $region11: #{_fused_forward.1} parent=0 // pred_check_branch
    %15 = sbr.rel (0) target = $region13
  $region12: #{_fused_forward.1} parent=0 // pred_region
    _
  $region13: #{_fused_forward.1} parent=0 // pred_fallthru
    _
  // Predicated region
  $region14: #{_fused_forward.1} parent=0 // pred_check
    _
  $region15: #{_fused_forward.1} parent=0 // pred_check_branch
    %17 = sbr.rel (0) target = $region17
  $region16: #{_fused_forward.1} parent=0 // pred_region
    _
  $region17: #{_fused_forward.1} parent=0 // pred_fallthru
    _
  // Predicated region
  $region18: #{_fused_forward.1} parent=0 // pred_check
    _
  $region19: #{_fused_forward.1} parent=0 // pred_check_branch
    %19 = sbr.rel (0) target = $region21
  $region20: #{_fused_forward.1} parent=0 // pred_region
    _
  $region21: #{_fused_forward.1} parent=0 // pred_fallthru
    _
  %v21 = vlaneseq
  %v22 = vand.u32 %v21, 127
  %v23 = vld [vmem:[%s0] sm:$0xff]
  %v24 = vld [vmem:[%s0 + $0x8] sm:$0xff]
  %v25 = vld [vmem:[%s0 + $0x10] sm:$0xff]
  %v26 = vld [vmem:[%s0 + $0x18] sm:$0xff]
  %v27 = vld [vmem:[%s0 + $0x20] sm:$0xff]
  %v28 = vld [vmem:[%s0 + $0x28] sm:$0xff]
  %v29 = vld [vmem:[%s0 + $0x30] sm:$0xff]
  %v30 = vld [vmem:[%s0 + $0x38] sm:$0xff]
  %31 = vset.pattern.permute.xlu0 0
  %32 = vperm.xlu0 %31, %v23
  %v33 = vpop.permute.xlu0 %32
  %34 = vset.pattern.permute.xlu0 0
  %35 = vperm.xlu0 %34, %v24
  %v36 = vpop.permute.xlu0 %35
  %37 = vset.pattern.permute.xlu0 0
  %38 = vperm.xlu0 %37, %v25
  %v39 = vpop.permute.xlu0 %38
  %40 = vset.pattern.permute.xlu0 0
  %41 = vperm.xlu0 %40, %v26
  %v42 = vpop.permute.xlu0 %41
  %43 = vset.pattern.permute.xlu0 0
  %44 = vperm.xlu0 %43, %v27
  %v45 = vpop.permute.xlu0 %44
  %46 = vset.pattern.permute.xlu0 0
  %47 = vperm.xlu0 %46, %v28
  %v48 = vpop.permute.xlu0 %47
  %49 = vset.pattern.permute.xlu0 0
  %50 = vperm.xlu0 %49, %v29
  %v51 = vpop.permute.xlu0 %50
  %52 = vset.pattern.permute.xlu0 0
  %53 = vperm.xlu0 %52, %v30
  %v54 = vpop.permute.xlu0 %53
  %vm55 = vcmp.eq.s32.totalorder %v22, %v33
  %vm56 = vcmp.eq.s32.totalorder %v22, %v36
  %vm57 = vcmp.eq.s32.totalorder %v22, %v39
  %vm58 = vcmp.eq.s32.totalorder %v22, %v42
  %vm59 = vcmp.eq.s32.totalorder %v22, %v45
  %vm60 = vcmp.eq.s32.totalorder %v22, %v48
  %vm61 = vcmp.eq.s32.totalorder %v22, %v51
  %vm62 = vcmp.eq.s32.totalorder %v22, %v54
  %v63 = vsel %vm55, 1.0, 0.0
  %v64 = vsel %vm56, 1.0, 0.0
  %v65 = vsel %vm57, 1.0, 0.0
  %v66 = vsel %vm58, 1.0, 0.0
  %v67 = vsel %vm59, 1.0, 0.0
  %v68 = vsel %vm60, 1.0, 0.0
  %v69 = vsel %vm61, 1.0, 0.0
  %v70 = vsel %vm62, 1.0, 0.0
  %v71 = vadd.f32 %v63, 0.0
  %v72 = vadd.f32 %v64, 0.0
  %v73 = vadd.f32 %v65, 0.0
  %v74 = vadd.f32 %v66, 0.0
  %v75 = vadd.f32 %v67, 0.0
  %v76 = vadd.f32 %v68, 0.0
  %v77 = vadd.f32 %v69, 0.0
  %v78 = vadd.f32 %v70, 0.0
  %v79 = vld [vmem:[%s1] sm:$0xff]
  %v80 = vld [vmem:[%s1 + $0x8] sm:$0xff]
  %v81 = vld [vmem:[%s1 + $0x10] sm:$0xff]
  %v82 = vld [vmem:[%s1 + $0x18] sm:$0xff]
  %v83 = vld [vmem:[%s1 + $0x20] sm:$0xff]
  %v84 = vld [vmem:[%s1 + $0x28] sm:$0xff]
  %v85 = vld [vmem:[%s1 + $0x30] sm:$0xff]
  %v86 = vld [vmem:[%s1 + $0x38] sm:$0xff]
  %87 = vset.pattern.permute.xlu0 0
  %88 = vperm.xlu0 %87, %v79
  %v89 = vpop.permute.xlu0 %88
  %90 = vset.pattern.permute.xlu0 0
  %91 = vperm.xlu0 %90, %v80
  %v92 = vpop.permute.xlu0 %91
  %93 = vset.pattern.permute.xlu0 0
  %94 = vperm.xlu0 %93, %v81
  %v95 = vpop.permute.xlu0 %94
  %96 = vset.pattern.permute.xlu0 0
  %97 = vperm.xlu0 %96, %v82
  %v98 = vpop.permute.xlu0 %97
  %99 = vset.pattern.permute.xlu0 0
  %100 = vperm.xlu0 %99, %v83
  %v101 = vpop.permute.xlu0 %100
  %102 = vset.pattern.permute.xlu0 0
  %103 = vperm.xlu0 %102, %v84
  %v104 = vpop.permute.xlu0 %103
  %105 = vset.pattern.permute.xlu0 0
  %106 = vperm.xlu0 %105, %v85
  %v107 = vpop.permute.xlu0 %106
  %108 = vset.pattern.permute.xlu0 0
  %109 = vperm.xlu0 %108, %v86
  %v110 = vpop.permute.xlu0 %109
  %vm111 = vcmp.eq.s32.totalorder %v22, %v89
  %vm112 = vcmp.eq.s32.totalorder %v22, %v92
  %vm113 = vcmp.eq.s32.totalorder %v22, %v95
  %vm114 = vcmp.eq.s32.totalorder %v22, %v98
  %vm115 = vcmp.eq.s32.totalorder %v22, %v101
  %vm116 = vcmp.eq.s32.totalorder %v22, %v104
  %vm117 = vcmp.eq.s32.totalorder %v22, %v107
  %vm118 = vcmp.eq.s32.totalorder %v22, %v110
  %v119 = vsel %vm111, 1.0, 0.0
  %v120 = vsel %vm112, 1.0, 0.0
  %v121 = vsel %vm113, 1.0, 0.0
  %v122 = vsel %vm114, 1.0, 0.0
  %v123 = vsel %vm115, 1.0, 0.0
  %v124 = vsel %vm116, 1.0, 0.0
  %v125 = vsel %vm117, 1.0, 0.0
  %v126 = vsel %vm118, 1.0, 0.0
  %v127 = vadd.f32 %v71, %v119
  %v128 = vadd.f32 %v72, %v120
  %v129 = vadd.f32 %v73, %v121
  %v130 = vadd.f32 %v74, %v122
  %v131 = vadd.f32 %v75, %v123
  %v132 = vadd.f32 %v76, %v124
  %v133 = vadd.f32 %v77, %v125
  %v134 = vadd.f32 %v78, %v126
  %v135 = vpack.c.bf16 %v128, %v127
  %v136 = vpack.c.bf16 %v130, %v129
  %v137 = vpack.c.bf16 %v132, %v131
  %v138 = vpack.c.bf16 %v134, %v133
  %v139 = vld [vmem:[%s2] sm:$0xf]
  %v140 = vld [vmem:[%s2 + $0x4] sm:$0xf]
  %v143 = vunpack.c.l.b16 %v139
  %v144 = vunpack.c.l.b16 %v140
  %v145 = vpack.c.b16 %v144, %v143
  %vm147 = vcmask 130048
  %v149 = vsel %vm147, %v135, 0
  %v152 = vsel %vm147, %v136, 0
  %v155 = vsel %vm147, %v137, 0
  %v158 = vsel %vm147, %v138, 0
  %160 = vmatprep.subr.bf16.mxu0 0
  %161 = vmatpush1.bf16.msra.mxu0 %v145
  %162 = vmatprep.subr.bf16.mxu0 0
  %163 = vmatpush1.bf16.msra.mxu0 0
  %164 = vmatprep.subr.bf16.mxu0 0
  %165 = vmatpush1.bf16.msra.mxu0 0
  %166 = vmatprep.subr.bf16.mxu0 0
  %167 = vmatpush1.bf16.msra.mxu0 0
  %168 = vmatprep.subr.bf16.mxu0 0
  %169 = vmatpush1.bf16.msra.mxu0 0
  %170 = vmatprep.subr.bf16.mxu0 0
  %171 = vmatpush1.bf16.msra.mxu0 0
  %172 = vmatprep.subr.bf16.mxu0 0
  %173 = vmatpush1.bf16.msra.mxu0 0
  %174 = vmatprep.subr.bf16.mxu0 0
  %175 = vmatpush1.bf16.msra.mxu0 0
  %176 = vmatprep.subr.bf16.mxu0 0
  %177 = vmatpush1.bf16.msra.mxu0 0
  %178 = vmatprep.subr.bf16.mxu0 0
  %179 = vmatpush1.bf16.msra.mxu0 0
  %180 = vmatprep.subr.bf16.mxu0 0
  %181 = vmatpush1.bf16.msra.mxu0 0
  %182 = vmatprep.subr.bf16.mxu0 0
  %183 = vmatpush1.bf16.msra.mxu0 0
  %184 = vmatprep.subr.bf16.mxu0 0
  %185 = vmatpush1.bf16.msra.mxu0 0
  %186 = vmatprep.subr.bf16.mxu0 0
  %187 = vmatpush1.bf16.msra.mxu0 0
  %188 = vmatprep.subr.bf16.mxu0 0
  %189 = vmatpush1.bf16.msra.mxu0 0
  %190 = vmatprep.subr.bf16.mxu0 0
  %191 = vmatpush1.bf16.msra.mxu0 0
  %192 = vmatprep.mubr.bf16.mxu0 0
  %193 = vmatmul.mubr.bf16.gmra.mrb[0].mxu0 %v149
  %v194 = vpop.f32.mrb[0].mxu0
  %v195 = vadd.f32 0.0, %v194
  %v196 = vpop.f32.mrb[0].mxu0
  %v197 = vpop.f32.mrb[0].mxu0
  %v198 = vadd.f32 0.0, %v197
  %v199 = vpop.f32.mrb[0].mxu0
  %200 = vmatprep.mubr.bf16.mxu0 0
  %201 = vmatmul.mubr.bf16.gmra.mrb[0].mxu0 %v152
  %v202 = vpop.f32.mrb[0].mxu0
  %v203 = vadd.f32 0.0, %v202
  %v204 = vpop.f32.mrb[0].mxu0
  %v205 = vpop.f32.mrb[0].mxu0
  %v206 = vadd.f32 0.0, %v205
  %v207 = vpop.f32.mrb[0].mxu0
  %208 = vmatprep.mubr.bf16.mxu0 0
  %209 = vmatmul.mubr.bf16.gmra.mrb[0].mxu0 %v155
  %v210 = vpop.f32.mrb[0].mxu0
  %v211 = vadd.f32 0.0, %v210
  %v212 = vpop.f32.mrb[0].mxu0
  %v213 = vpop.f32.mrb[0].mxu0
  %v214 = vadd.f32 0.0, %v213
  %v215 = vpop.f32.mrb[0].mxu0
  %216 = vmatprep.mubr.bf16.mxu0 0
  %217 = vmatmul.mubr.bf16.gmra.mrb[0].mxu0 %v158
  %v218 = vpop.f32.mrb[0].mxu0
  %v219 = vadd.f32 0.0, %v218
  %v220 = vpop.f32.mrb[0].mxu0
  %v221 = vpop.f32.mrb[0].mxu0
  %v222 = vadd.f32 0.0, %v221
  %v223 = vpop.f32.mrb[0].mxu0
  %224 = vdwg.mxu0
  %v225 = vpack.c.bf16 %v198, %v195
  %v226 = vpack.c.bf16 %v206, %v203
  %v227 = vpack.c.bf16 %v214, %v211
  %v228 = vpack.c.bf16 %v222, %v219
  %v229 = vld [vmem:[%s3] sm:$0xf]
  %v230 = vld [vmem:[%s3 + $0x4] sm:$0xf]
  %v231 = vld [vmem:[%s3 + $0x8] sm:$0xf]
  %v232 = vld [vmem:[%s3 + $0xc] sm:$0xf]
  %v233 = vld [vmem:[%s4] sm:$0x1]
  %v235 = vlaneseq
  %v236 = vshrl.u32 %v235, 7
  %v237 = vsub.s32 0, %v236
  %v238 = vrot.slane %v233, %v237
  %v244 = vunpack.c.l.b16 %v229
  %v245 = vunpack.c.l.b16 %v230
  %v246 = vunpack.c.l.b16 %v231
  %v247 = vunpack.c.l.b16 %v232
  %v248 = vpack.c.b16 %v245, %v244
  %v249 = vpack.c.b16 %v247, %v246
  %vm252 = vcmask 261120
  %v254 = vsel %vm252, %v225, 0
  %v257 = vsel %vm252, %v226, 0
  %v260 = vsel %vm252, %v227, 0
  %v263 = vsel %vm252, %v228, 0
  %265 = vmatprep.subr.bf16.mxu0 0
  %266 = vmatpush1.bf16.msra.mxu0 %v248
  %267 = vmatprep.subr.bf16.mxu0 0
  %268 = vmatpush1.bf16.msra.mxu0 %v249
  %269 = vmatprep.subr.bf16.mxu0 0
  %270 = vmatpush1.bf16.msra.mxu0 0
  %271 = vmatprep.subr.bf16.mxu0 0
  %272 = vmatpush1.bf16.msra.mxu0 0
  %273 = vmatprep.subr.bf16.mxu0 0
  %274 = vmatpush1.bf16.msra.mxu0 0
  %275 = vmatprep.subr.bf16.mxu0 0
  %276 = vmatpush1.bf16.msra.mxu0 0
  %277 = vmatprep.subr.bf16.mxu0 0
  %278 = vmatpush1.bf16.msra.mxu0 0
  %279 = vmatprep.subr.bf16.mxu0 0
  %280 = vmatpush1.bf16.msra.mxu0 0
  %281 = vmatprep.subr.bf16.mxu0 0
  %282 = vmatpush1.bf16.msra.mxu0 0
  %283 = vmatprep.subr.bf16.mxu0 0
  %284 = vmatpush1.bf16.msra.mxu0 0
  %285 = vmatprep.subr.bf16.mxu0 0
  %286 = vmatpush1.bf16.msra.mxu0 0
  %287 = vmatprep.subr.bf16.mxu0 0
  %288 = vmatpush1.bf16.msra.mxu0 0
  %289 = vmatprep.subr.bf16.mxu0 0
  %290 = vmatpush1.bf16.msra.mxu0 0
  %291 = vmatprep.subr.bf16.mxu0 0
  %292 = vmatpush1.bf16.msra.mxu0 0
  %293 = vmatprep.subr.bf16.mxu0 0
  %294 = vmatpush1.bf16.msra.mxu0 0
  %295 = vmatprep.subr.bf16.mxu0 0
  %296 = vmatpush1.bf16.msra.mxu0 0
  %297 = vmatprep.mubr.bf16.mxu0 0
  %298 = vmatmul.mubr.bf16.gmra.mrb[0].mxu0 %v254
  %v299 = vpop.f32.mrb[0].mxu0
  %v300 = vadd.f32 %v238, %v299
  %v301 = vpop.f32.mrb[0].mxu0
  %v302 = vpop.f32.mrb[0].mxu0
  %v303 = vadd.f32 %v238, %v302
  %v304 = vpop.f32.mrb[0].mxu0
  %305 = vmatprep.mubr.bf16.mxu0 0
  %306 = vmatmul.mubr.bf16.gmra.mrb[0].mxu0 %v257
  %v307 = vpop.f32.mrb[0].mxu0
  %v308 = vadd.f32 %v238, %v307
  %v309 = vpop.f32.mrb[0].mxu0
  %v310 = vpop.f32.mrb[0].mxu0
  %v311 = vadd.f32 %v238, %v310
  %v312 = vpop.f32.mrb[0].mxu0
  %313 = vmatprep.mubr.bf16.mxu0 0
  %314 = vmatmul.mubr.bf16.gmra.mrb[0].mxu0 %v260
  %v315 = vpop.f32.mrb[0].mxu0
  %v316 = vadd.f32 %v238, %v315
  %v317 = vpop.f32.mrb[0].mxu0
  %v318 = vpop.f32.mrb[0].mxu0
  %v319 = vadd.f32 %v238, %v318
  %v320 = vpop.f32.mrb[0].mxu0
  %321 = vmatprep.mubr.bf16.mxu0 0
  %322 = vmatmul.mubr.bf16.gmra.mrb[0].mxu0 %v263
  %v323 = vpop.f32.mrb[0].mxu0
  %v324 = vadd.f32 %v238, %v323
  %v325 = vpop.f32.mrb[0].mxu0
  %v326 = vpop.f32.mrb[0].mxu0
  %v327 = vadd.f32 %v238, %v326
  %v328 = vpop.f32.mrb[0].mxu0
  %329 = vdwg.mxu0
  %330 = vst [vmem:[%s5] sm:$0xff] %v300
  %331 = vst [vmem:[%s5 + $0x8] sm:$0xff] %v303
  %332 = vst [vmem:[%s5 + $0x10] sm:$0xff] %v308
  %333 = vst [vmem:[%s5 + $0x18] sm:$0xff] %v311
  %334 = vst [vmem:[%s5 + $0x20] sm:$0xff] %v316
  %335 = vst [vmem:[%s5 + $0x28] sm:$0xff] %v319
  %336 = vst [vmem:[%s5 + $0x30] sm:$0xff] %v324
  %337 = vst [vmem:[%s5 + $0x38] sm:$0xff] %v327
  // Predicated region
  $region22: #{_fused_forward.1} parent=0 // pred_check
    _
  $region23: #{_fused_forward.1} parent=0 // pred_check_branch
    %339 = sbr.rel (0) target = $region25
  $region24: #{_fused_forward.1} parent=0 // pred_region
    _
  $region25: #{_fused_forward.1} parent=0 // pred_fallthru
    _
  // Predicated region
  $region26: #{_fused_forward.1} parent=0 // pred_check
    _
  $region27: #{_fused_forward.1} parent=0 // pred_check_branch
    %341 = sbr.rel (0) target = $region29
  $region28: #{_fused_forward.1} parent=0 // pred_region
    _
  $region29: #{_fused_forward.1} parent=0 // pred_fallthru
    _

</llo_original>
